<compile_context>
chip_gen: v6e
topology: v6e:2x2x1
jax: 0.10.0
libtpu: 0.0.40
codegen_flags: <defaults>
</compile_context>

<pallas_src>
import jax
import jax.numpy as jnp
from jax.experimental import pallas as pl
from jax.experimental.pallas import tpu as pltpu


# ----------------------------------------------------------------------------- kernel body

def _fc_kernel(x_ref, w_ref, o_ref):
    # x_ref: (bn, T*d) sample-row tile; w_ref: (T*d, T*d) banded weight (resident);
    # o_ref: (bn, T*d).  Single 2-D MXU matmul, f32 accumulation, full precision
    # (HIGHEST) so results match the f32 PyTorch Linear.
    o_ref[...] = jnp.dot(
        x_ref[...],
        w_ref[...],
        preferred_element_type=jnp.float32,
        precision=jax.lax.Precision.HIGHEST,
    ).astype(o_ref.dtype)


# ----------------------------------------------------------------------------- helpers

def _cdiv(a, b):
    return -(-a // b)


def _round_up(x, m):
    return (x + m - 1) // m * m


def build_banded_weight(W, d, p, T):
    """(d, d*(p+1)) Linear weight -> (T*d, T*d) block-banded matrix such that
    X.reshape(n, T*d) @ Wband == (X_past @ W^T).reshape(n, T*d).
    Column-block ordering of W follows SpinSVAR: block j multiplies X_{t-(p-j)};
    the band is truncated at t<p, which is exactly X_past's zero padding."""
    K = d * (p + 1)
    Wt = W.T  # (K, d); row-block j == W[:, j*d:(j+1)*d]^T
    Wband = jnp.zeros((T * d, T * d), W.dtype)
    for t in range(T):
        r0 = (t - p) * d               # first input row (time t-p) feeding output time t
        src = max(0, -r0)              # rows of Wt that would hit negative time (zero pad)
        dst = max(0, r0)
        Wband = Wband.at[dst:dst + (K - src), t * d:(t + 1) * d].set(Wt[src:, :])
    return Wband


def _choose_row_tile(n, bn):
    """8-aligned sample-row tile, capped at ~n/2 so the parallel grid axis has
    at least 2 steps (work for both of v7x's TensorCores; no wasted full tile
    when n is just above bn)."""
    bn = max(8, _round_up(bn, 8))
    half = max(8, _round_up(_cdiv(n, 2), 8))
    return min(bn, half)


# ----------------------------------------------------------------------------- forward

def make_spinsvar_forward(W, p, T, *, bn=8192):
    """Build the banded weight ONCE and return a jitted forward: X (n,T,d) -> (n,T,d).

    Equivalent to the PyTorch module's forward(): fc(X_past)."""
    d = W.shape[0]
    assert W.shape == (d, d * (p + 1)), "W must be (d, d*(p+1))"
    TD = T * d
    Wband = build_banded_weight(W.astype(jnp.float32), d, p, T)  # tiny; hoisted out of forward

    def _forward(X):
        n, Tx, dx = X.shape
        assert (Tx, dx) == (T, d), "X must be (n, T, d)"
        Xrow = X.reshape(n, TD).astype(jnp.float32)  # free row-major view; read once

        bn_eff = _choose_row_tile(n, bn)
        grid = _cdiv(n, bn_eff)  # ragged last block handled by Pallas masking

        # Double-buffered input+output row tiles + double-buffered weight + margin.
        tile_bytes = bn_eff * TD * 4
        vmem_limit = int(min(56 << 20,
                             max(32 << 20, 4 * tile_bytes + 2 * TD * TD * 4 + (8 << 20))))

        out = pl.pallas_call(
            _fc_kernel,
            out_shape=jax.ShapeDtypeStruct((n, TD), jnp.float32),
            grid_spec=pltpu.PrefetchScalarGridSpec(
                num_scalar_prefetch=0,
                grid=(grid,),
                in_specs=[
                    pl.BlockSpec((bn_eff, TD), lambda i: (i, 0)),  # sample-row tile
                    pl.BlockSpec((TD, TD), lambda i: (0, 0)),      # banded weight, resident
                ],
                out_specs=pl.BlockSpec((bn_eff, TD), lambda i: (i, 0)),
            ),
            compiler_params=pltpu.CompilerParams(
                dimension_semantics=("parallel",),  # shards rows across TCs on v7x
                vmem_limit_bytes=vmem_limit,
            ),
        )(Xrow, Wband)

        return out.reshape(n, T, d)

    return jax.jit(_forward)


def spinsvar_forward(X, W, p, *, bn=8192):
    """Convenience one-shot wrapper (builds the band + jits per call; prefer
    make_spinsvar_forward for repeated use)."""
    _, T, _ = X.shape
    return make_spinsvar_forward(W, p, T, bn=bn)(X)


def build_x_past(X, p):
    """Reference lagged stacking (matches SpinSVAR / postprocess_A column order):
    block j of the feature axis is X_{t-(p-j)}, zero-padded for t < lag."""
    n, T, d = X.shape
    blocks = []
    for lag in range(p, -1, -1):
        shifted = jnp.pad(X, ((0, 0), (lag, 0), (0, 0)))[:, :T, :]
        blocks.append(shifted)
    return jnp.concatenate(blocks, axis=-1)  # (n, T, d*(p+1))


# ----------------------------------------------------------------------------- demo / test

if __name__ == "__main__":
    # Small shapes consistent with the module: n samples, T timesteps, d variables.
    n, T, d, p = 20, 8, 16, 3
    K = d * (p + 1)

    key = jax.random.PRNGKey(0)
    kx, kw = jax.random.split(key)

    X = jax.random.normal(kx, (n, T, d), dtype=jnp.float32)          # time-series data
    bound = 1.0 / float(K) ** 0.5                                    # nn.Linear-style init
    W = jax.random.uniform(kw, (d, K), dtype=jnp.float32, minval=-bound, maxval=bound)

    # Default tile: cap at ~n/2 -> 2-step grid with a ragged (masked) last block.
    forward = make_spinsvar_forward(W, p, T)
    out = forward(X)

    # Small tile: 3-step grid, partial last block of 4 rows (exercises edge masking).
    forward_small = make_spinsvar_forward(W, p, T, bn=8)
    out_small = forward_small(X)

    jax.block_until_ready((out, out_small))

    # Reference: the original module semantics, X_past @ W^T (full precision).
    X_past = build_x_past(X, p)                                      # (n, T, K)
    ref = jnp.einsum("ntk,dk->ntd", X_past, W,
                     precision=jax.lax.Precision.HIGHEST)

    assert out.shape == (n, T, d)
    assert jnp.allclose(out, ref, atol=1e-4, rtol=1e-4)
    assert jnp.allclose(out_small, ref, atol=1e-4, rtol=1e-4)

    # TODO(synk): l1_reg / logdet / acyclicity (matrix_exp / matrix_power / det) /
    # postprocess_A are training-loss / post-hoc utilities, not part of forward();
    # they stay in plain JAX/XLA land.
    print("KERNEL_OK")
</pallas_src>

<mosaic_0001>
module attributes {stable_mosaic.version = 11 : i64} {
  func.func @_fc_kernel(%arg0: i32, %arg1: memref<16x128xf32, #tpu.memory_space<vmem>>, %arg2: memref<128x128xf32, #tpu.memory_space<vmem>>, %arg3: memref<16x128xf32, #tpu.memory_space<vmem>>) attributes {dimension_semantics = [#tpu.dimension_semantics<parallel>], iteration_bounds = array<i64: 2>, scalar_prefetch = 0 : i64, scratch_operands = 0 : i64, tpu.core_type = #tpu.core_type<tc>, window_params = [{transform_indices = @transform_0, window_bounds = array<i64: 16, 128>}, {pipeline_mode = #tpu.pipeline_mode<synchronous>, transform_indices = @transform_1, window_bounds = array<i64: 128, 128>}, {transform_indices = @transform_2, window_bounds = array<i64: 16, 128>}]} {
    %c0 = arith.constant 0 : index
    %c0_0 = arith.constant 0 : index
    %0 = vector.load %arg1[%c0, %c0_0] : memref<16x128xf32, #tpu.memory_space<vmem>>, vector<16x128xf32>
    %c0_1 = arith.constant 0 : index
    %c0_2 = arith.constant 0 : index
    %1 = vector.load %arg2[%c0_1, %c0_2] : memref<128x128xf32, #tpu.memory_space<vmem>>, vector<128x128xf32>
    %cst = arith.constant dense<0.000000e+00> : vector<16x128xf32>
    %2 = tpu.matmul %0, %1, %cst {dimension_numbers = #tpu.dot_dimension_numbers<[1], [0], [0], [1], [0, 0, 1, 1], [], []>, precision = #tpu.contract_precision<fp32>} : vector<16x128xf32>, vector<128x128xf32>, vector<16x128xf32> -> vector<16x128xf32>
    %c0_3 = arith.constant 0 : index
    %c0_4 = arith.constant 0 : index
    %3 = vector.load %arg3[%c0_3, %c0_4] : memref<16x128xf32, #tpu.memory_space<vmem>>, vector<16x128xf32>
    tpu.vector_store %arg3[%c0_3, %c0_4], %2 {strides = array<i32>} : memref<16x128xf32, #tpu.memory_space<vmem>>, vector<16x128xf32>,
    return
  }
  func.func @transform_0(%arg0: i32) -> (i32, i32) {
    %c0_i32 = arith.constant 0 : i32
    %c0_i32_0 = arith.constant 0 : i32
    return %arg0, %c0_i32 : i32, i32
  }
  func.func @transform_1(%arg0: i32) -> (i32, i32) {
    %c0_i32 = arith.constant 0 : i32
    %c0_i32_0 = arith.constant 0 : i32
    %c0_i32_1 = arith.constant 0 : i32
    return %c0_i32, %c0_i32_0 : i32, i32
  }
  func.func @transform_2(%arg0: i32) -> (i32, i32) {
    %c0_i32 = arith.constant 0 : i32
    %c0_i32_0 = arith.constant 0 : i32
    return %arg0, %c0_i32 : i32, i32
  }
}

</mosaic_0001>

<llo_original>
// kernel: _forward.1
$region0: #{_forward.1}
  #allocation0 [shape = 'u32[]', space=smem, size = 0x4, offset = 0x4, fixed_abs, tag = 'smem constant byte address 0x4 - core index']
  #allocation1 [shape = 'u32[144,128]{1,0:T(1,128)}', space=vmem, size = 0x12000, scoped, tag = 'internal scratch']
  %s0 = inlined_call_operand.vmem [shape: f32[20,128], index: 0, kind: input, shape index: {}]
  %s1 = inlined_call_operand.vmem [shape: f32[128,128], index: 1, kind: input, shape index: {}]
  %s2 = inlined_call_operand.vmem [shape: f32[20,128], index: 2, kind: output, shape index: {}]
  %s3 = sld [smem:[#allocation0]]
  $region89: #{_forward.1} parent=0
    _
  %s5 = ssub.s32 1, %s3
  %s6 = scalar_select 0, %s5, %s3
  $region1: #{_forward.1} parent=0
    #allocation2 [shape = 'u8[16384]{0}', space=vmem, size = 0x4000, scoped, tag = 'output window, operand 0']
    loop: start=0, step=1, limit=4
    $region2: #{_forward.1} parent=1 // loop_pre_header
      _
    $region3: #{_forward.1} parent=1 // loop_header
      %s8 = sphi 0, %s12
      %p9 = scmp.ge.s32.totalorder %s8, 4
      %s18 = sphi 0, %s20
      %s21 = sphi 0, %s18
      %s22 = sphi 0, %s21
      %s38 = sphi 0, %s22
      %s42 = sphi 0, %s42
      %s44 = sphi 0, %s42
      %s45 = sphi 0, %s44
      %s59 = sphi 0, %s45
      %s65 = sphi 0, %s67
      %s68 = sphi 0, %s65
      %s69 = sphi 0, %s68
      %s85 = sphi 0, %s69
    $region4: #{_forward.1} parent=1 // loop_header_branch
      %11 = sbr.rel (%p9) target = $region8
    $region5: #{_forward.1} parent=1 // loop_body
      %s13 = ssub.s32 %s8, 1
      %s14 = ssub.s32 %s8, 2
      %s15 = sadd.s32 %s8, 1
      %s16 = ssub.s32 %s8, %s15
      %p17 = scmp.eq.s32.totalorder %s16, 0
      %s19 = sadd.s32 %s18, 1
      %s20 = scalar_select %p17, %s18, %s19
      %p23 = pneg %p17
      %p24 = scmp.eq.s32.totalorder %s8, 1
      %p25 = por %p23, %p24
      %p26 = scmp.ne.s32.totalorder %s18, %s21
      %p27 = scmp.eq.s32.totalorder %s8, 0
      %p28 = por %p26, %p27
      %p29 = scmp.ne.s32.totalorder %s18, %s21
      %p30 = scmp.eq.s32.totalorder %s13, 1
      %p31 = por %p29, %p30
      %p32 = scmp.ne.s32.totalorder %s21, %s22
      %p33 = scmp.eq.s32.totalorder %s13, 0
      %p34 = por %p32, %p33
      %p35 = scmp.ne.s32.totalorder %s21, %s22
      %p36 = scmp.eq.s32.totalorder %s14, 1
      %p37 = por %p35, %p36
      %p39 = scmp.ne.s32.totalorder %s22, %s38
      %p40 = scmp.eq.s32.totalorder %s14, 0
      %p41 = por %p39, %p40
      %s43 = sadd.s32 %s42, 1
      %p46 = scmp.eq.s32.totalorder %s8, 1
      %p47 = scmp.ne.s32.totalorder %s42, %s44
      %p48 = scmp.eq.s32.totalorder %s8, 0
      %p49 = por %p47, %p48
      %p50 = scmp.ne.s32.totalorder %s42, %s44
      %p51 = scmp.eq.s32.totalorder %s13, 1
      %p52 = por %p50, %p51
      %p53 = scmp.ne.s32.totalorder %s44, %s45
      %p54 = scmp.eq.s32.totalorder %s13, 0
      %p55 = por %p53, %p54
      %p56 = scmp.ne.s32.totalorder %s44, %s45
      %p57 = scmp.eq.s32.totalorder %s14, 1
      %p58 = por %p56, %p57
      %p60 = scmp.ne.s32.totalorder %s45, %s59
      %p61 = scmp.eq.s32.totalorder %s14, 0
      %p62 = por %p60, %p61
      %s63 = ssub.s32 %s8, %s15
      %p64 = scmp.eq.s32.totalorder %s63, 0
      %s66 = sadd.s32 %s65, 1
      %s67 = scalar_select %p64, %s65, %s66
      %p70 = pneg %p64
      %p71 = scmp.eq.s32.totalorder %s8, 1
      %p72 = por %p70, %p71
      %p73 = scmp.ne.s32.totalorder %s65, %s68
      %p74 = scmp.eq.s32.totalorder %s8, 0
      %p75 = por %p73, %p74
      %p76 = scmp.ne.s32.totalorder %s65, %s68
      %p77 = scmp.eq.s32.totalorder %s13, 1
      %p78 = por %p76, %p77
      %p79 = scmp.ne.s32.totalorder %s68, %s69
      %p80 = scmp.eq.s32.totalorder %s13, 0
      %p81 = por %p79, %p80
      %p82 = scmp.ne.s32.totalorder %s68, %s69
      %p83 = scmp.eq.s32.totalorder %s14, 1
      %p84 = por %p82, %p83
      %p86 = scmp.ne.s32.totalorder %s69, %s85
      %p87 = scmp.eq.s32.totalorder %s14, 0
      %p88 = por %p86, %p87
      %p89 = scmp.le.s32.totalorder 1, %s8
      %p90 = scmp.lt.s32.totalorder %s8, 3
      %p91 = pnand %p89, %p90
      %p92 = pneg %p91
      // Predicated region
      $region9: #{_forward.1} parent=5 // pred_check
        _
      $region10: #{_forward.1} parent=5 // pred_check_branch
        %94 = sbr.rel (%p91) target = $region12
      $region11: #{_forward.1} parent=5 // pred_region
        %s95 = ssub.s32 %s8, 1
        // Predicated region
        $region13: #{_forward.1} parent=11 // pred_check
          %p96 = pneg %p55
        $region14: #{_forward.1} parent=11 // pred_check_branch
          %98 = sbr.rel (%p96) target = $region16
        $region15: #{_forward.1} parent=11 // pred_region
          _
        $region16: #{_forward.1} parent=11 // pred_fallthru
          _
      $region12: #{_forward.1} parent=5 // pred_fallthru
        _
      %p99 = scmp.lt.s32.totalorder %s8, 2
      // Predicated region
      $region17: #{_forward.1} parent=5 // pred_check
        %p100 = pneg %p99
      $region18: #{_forward.1} parent=5 // pred_check_branch
        %102 = sbr.rel (%p100) target = $region20
      $region19: #{_forward.1} parent=5 // pred_region
        // Predicated region
        $region21: #{_forward.1} parent=19 // pred_check
          %p103 = pneg %p28
        $region22: #{_forward.1} parent=19 // pred_check_branch
          %105 = sbr.rel (%p103) target = $region24
        $region23: #{_forward.1} parent=19 // pred_region
          %s106 = smul.u32 2, %s8
          %s107 = ssub.s32 3, %s106
          %p108 = scmp.lt.s32.totalorder %s107, 2
          %s109 = scalar_select %p108, %s107, 2
          %s110 = smul.u32 128, %s109
          %p111 = scmp.lt.s32.totalorder %s106, 2
          %s112 = scalar_select %p111, %s106, 2
          %s113 = smul.addr %s112, 8
          %s114 = scalar_lea.vmem %s0, %s113
          %s115 = smul.u32 2, %s8
          %s116 = ssub.s32 3, %s115
          %p117 = scmp.lt.s32.totalorder %s116, 2
          %s118 = scalar_select %p117, %s116, 2
          %s119 = smul.u32 128, %s118
        $region24: #{_forward.1} parent=19 // pred_fallthru
          _
      $region20: #{_forward.1} parent=5 // pred_fallthru
        _
      %p120 = scmp.le.s32.totalorder 1, %s8
      %p121 = scmp.lt.s32.totalorder %s8, 3
      %p122 = pnand %p120, %p121
      %p123 = pneg %p122
      // Predicated region
      $region25: #{_forward.1} parent=5 // pred_check
        _
      $region26: #{_forward.1} parent=5 // pred_check_branch
        %125 = sbr.rel (%p122) target = $region28
      $region27: #{_forward.1} parent=5 // pred_region
        %s126 = ssub.s32 %s8, 1
        %s127 = smul.u32 2, %s13
        %s128 = ssub.s32 3, %s127
        %p129 = scmp.lt.s32.totalorder %s128, 2
        %s130 = scalar_select %p129, %s128, 2
        %s131 = smul.u32 128, %s130
        %p132 = scmp.lt.s32.totalorder %s127, 2
        %s133 = scalar_select %p132, %s127, 2
        %s134 = smul.addr %s133, 8
        %s135 = scalar_lea.vmem %s0, %s134
        %p136 = pneg %p34
        %p137 = pneg %p31
        %p138 = pneg %p55
        %p139 = pneg %p52
        %p140 = pneg %p81
        %p141 = pneg %p78
        %s142 = sand.u32 %s68, 1
        %s143 = sand.u32 %s68, 1
        %s144 = smul.addr %s143, 16
        %s145 = scalar_lea.vmem [#allocation2], %s144
        %s146 = smul.u32 2, %s13
        %s147 = ssub.s32 3, %s146
        %p148 = scmp.lt.s32.totalorder %s147, 2
        %s149 = scalar_select %p148, %s147, 2
        %s150 = smul.u32 128, %s149
        %p151 = scmp.lt.s32.totalorder %s146, 2
        %s152 = scalar_select %p151, %s146, 2
        %s153 = smul.addr %s152, 8
        %s154 = scalar_lea.vmem %s0, %s153
        %s155 = smul.u32 2, %s13
        %s156 = ssub.s32 3, %s155
        %p157 = scmp.lt.s32.totalorder %s156, 2
        %s158 = scalar_select %p157, %s156, 2
        %s159 = smul.u32 128, %s158
        %s160 = smul.u32 2, %s13
        %s161 = ssub.s32 3, %s160
        %p162 = scmp.lt.s32.totalorder %s161, 2
        %s163 = scalar_select %p162, %s161, 2
        %s164 = smul.u32 128, %s163
        %v165 = vld [vmem:[%s154] sm:$0xff]
        %v166 = vld [vmem:[%s154 + $0x8] sm:$0xff]
        %v167 = vld [vmem:[%s1] sm:$0xff]
        %v168 = vld [vmem:[%s1 + $0x8] sm:$0xff]
        %v169 = vld [vmem:[%s1 + $0x10] sm:$0xff]
        %v170 = vld [vmem:[%s1 + $0x18] sm:$0xff]
        %v171 = vld [vmem:[%s1 + $0x20] sm:$0xff]
        %v172 = vld [vmem:[%s1 + $0x28] sm:$0xff]
        %v173 = vld [vmem:[%s1 + $0x30] sm:$0xff]
        %v174 = vld [vmem:[%s1 + $0x38] sm:$0xff]
        %v175 = vld [vmem:[%s1 + $0x40] sm:$0xff]
        %v176 = vld [vmem:[%s1 + $0x48] sm:$0xff]
        %v177 = vld [vmem:[%s1 + $0x50] sm:$0xff]
        %v178 = vld [vmem:[%s1 + $0x58] sm:$0xff]
        %v179 = vld [vmem:[%s1 + $0x60] sm:$0xff]
        %v180 = vld [vmem:[%s1 + $0x68] sm:$0xff]
        %v181 = vld [vmem:[%s1 + $0x70] sm:$0xff]
        %v182 = vld [vmem:[%s1 + $0x78] sm:$0xff]
        %183 = vmatprep.subr.mxu0 0.0
        %v184 = vand.u32 %v182, 4294901760
        %185 = vmatpush1.msra.mxu0 %v184
        %186 = vmatprep.subr.mxu0 0.0
        %v187 = vand.u32 %v181, 4294901760
        %188 = vmatpush1.msra.mxu0 %v187
        %189 = vmatprep.subr.mxu0 0.0
        %v190 = vand.u32 %v180, 4294901760
        %191 = vmatpush1.msra.mxu0 %v190
        %192 = vmatprep.subr.mxu0 0.0
        %v193 = vand.u32 %v179, 4294901760
        %194 = vmatpush1.msra.mxu0 %v193
        %195 = vmatprep.subr.mxu0 0.0
        %v196 = vand.u32 %v178, 4294901760
        %197 = vmatpush1.msra.mxu0 %v196
        %198 = vmatprep.subr.mxu0 0.0
        %v199 = vand.u32 %v177, 4294901760
        %200 = vmatpush1.msra.mxu0 %v199
        %201 = vmatprep.subr.mxu0 0.0
        %v202 = vand.u32 %v176, 4294901760
        %203 = vmatpush1.msra.mxu0 %v202
        %204 = vmatprep.subr.mxu0 0.0
        %v205 = vand.u32 %v175, 4294901760
        %206 = vmatpush1.msra.mxu0 %v205
        %207 = vmatprep.subr.mxu0 0.0
        %v208 = vand.u32 %v174, 4294901760
        %209 = vmatpush1.msra.mxu0 %v208
        %210 = vmatprep.subr.mxu0 0.0
        %v211 = vand.u32 %v173, 4294901760
        %212 = vmatpush1.msra.mxu0 %v211
        %213 = vmatprep.subr.mxu0 0.0
        %v214 = vand.u32 %v172, 4294901760
        %215 = vmatpush1.msra.mxu0 %v214
        %216 = vmatprep.subr.mxu0 0.0
        %v217 = vand.u32 %v171, 4294901760
        %218 = vmatpush1.msra.mxu0 %v217
        %219 = vmatprep.subr.mxu0 0.0
        %v220 = vand.u32 %v170, 4294901760
        %221 = vmatpush1.msra.mxu0 %v220
        %222 = vmatprep.subr.mxu0 0.0
        %v223 = vand.u32 %v169, 4294901760
        %224 = vmatpush1.msra.mxu0 %v223
        %225 = vmatprep.subr.mxu0 0.0
        %v226 = vand.u32 %v168, 4294901760
        %227 = vmatpush1.msra.mxu0 %v226
        %228 = vmatprep.subr.mxu0 0.0
        %v229 = vand.u32 %v167, 4294901760
        %230 = vmatpush1.msra.mxu0 %v229
        %231 = vmatprep.subr.mxu0 0.0
        %232 = vmatpush2.msra.mxu0 0.0
        %233 = vmatprep.subr.mxu0 0.0
        %234 = vmatpush2.msra.mxu0 0.0
        %235 = vmatprep.subr.mxu0 0.0
        %236 = vmatpush2.msra.mxu0 0.0
        %237 = vmatprep.subr.mxu0 0.0
        %238 = vmatpush2.msra.mxu0 0.0
        %239 = vmatprep.subr.mxu0 0.0
        %240 = vmatpush2.msra.mxu0 0.0
        %241 = vmatprep.subr.mxu0 0.0
        %242 = vmatpush2.msra.mxu0 0.0
        %243 = vmatprep.subr.mxu0 0.0
        %244 = vmatpush2.msra.mxu0 0.0
        %245 = vmatprep.subr.mxu0 0.0
        %246 = vmatpush2.msra.mxu0 0.0
        %247 = vmatprep.subr.mxu0 0.0
        %248 = vmatpush2.msra.mxu0 0.0
        %249 = vmatprep.subr.mxu0 0.0
        %250 = vmatpush2.msra.mxu0 0.0
        %251 = vmatprep.subr.mxu0 0.0
        %252 = vmatpush2.msra.mxu0 0.0
        %253 = vmatprep.subr.mxu0 0.0
        %254 = vmatpush2.msra.mxu0 0.0
        %255 = vmatprep.subr.mxu0 0.0
        %256 = vmatpush2.msra.mxu0 0.0
        %257 = vmatprep.subr.mxu0 0.0
        %258 = vmatpush2.msra.mxu0 0.0
        %259 = vmatprep.subr.mxu0 0.0
        %260 = vmatpush2.msra.mxu0 0.0
        %261 = vmatprep.subr.mxu0 0.0
        %262 = vmatpush2.msra.mxu0 0.0
        %263 = vmatprep.mubr.f32.mxu0 0.0
        %v264 = vand.u32 %v165, 4294901760
        %v265 = vsub.f32 %v165, %v264
        %v266 = vand.u32 %v265, 4294901760
        %v267 = vsub.f32 %v265, %v266
        %v268 = vand.u32 %v267, 4294901760
        %269 = vmatmul.mubr.f32.gmra.mxu0 %v268
        %v270 = vpop.f32.mrf.mxu0
        %v271 = vadd.f32 0.0, %v270
        %v272 = vpop.f32.mrf.mxu0
        %273 = vmatprep.mubr.f32.mxu0 0.0
        %v274 = vand.u32 %v166, 4294901760
        %v275 = vsub.f32 %v166, %v274
        %v276 = vand.u32 %v275, 4294901760
        %v277 = vsub.f32 %v275, %v276
        %v278 = vand.u32 %v277, 4294901760
        %279 = vmatmul.mubr.f32.gmra.mxu0 %v278
        %v280 = vpop.f32.mrf.mxu0
        %v281 = vadd.f32 0.0, %v280
        %v282 = vpop.f32.mrf.mxu0
        %283 = vdwg.mxu0
        %284 = vmatprep.subr.mxu0 0.0
        %v285 = vand.u32 %v182, 4294901760
        %v286 = vsub.f32 %v182, %v285
        %v287 = vand.u32 %v286, 4294901760
        %v288 = vsub.f32 %v286, %v287
        %v289 = vand.u32 %v288, 4294901760
        %290 = vmatpush1.msra.mxu0 %v289
        %291 = vmatprep.subr.mxu0 0.0
        %v292 = vand.u32 %v181, 4294901760
        %v293 = vsub.f32 %v181, %v292
        %v294 = vand.u32 %v293, 4294901760
        %v295 = vsub.f32 %v293, %v294
        %v296 = vand.u32 %v295, 4294901760
        %297 = vmatpush1.msra.mxu0 %v296
        %298 = vmatprep.subr.mxu0 0.0
        %v299 = vand.u32 %v180, 4294901760
        %v300 = vsub.f32 %v180, %v299
        %v301 = vand.u32 %v300, 4294901760
        %v302 = vsub.f32 %v300, %v301
        %v303 = vand.u32 %v302, 4294901760
        %304 = vmatpush1.msra.mxu0 %v303
        %305 = vmatprep.subr.mxu0 0.0
        %v306 = vand.u32 %v179, 4294901760
        %v307 = vsub.f32 %v179, %v306
        %v308 = vand.u32 %v307, 4294901760
        %v309 = vsub.f32 %v307, %v308
        %v310 = vand.u32 %v309, 4294901760
        %311 = vmatpush1.msra.mxu0 %v310
        %312 = vmatprep.subr.mxu0 0.0
        %v313 = vand.u32 %v178, 4294901760
        %v314 = vsub.f32 %v178, %v313
        %v315 = vand.u32 %v314, 4294901760
        %v316 = vsub.f32 %v314, %v315
        %v317 = vand.u32 %v316, 4294901760
        %318 = vmatpush1.msra.mxu0 %v317
        %319 = vmatprep.subr.mxu0 0.0
        %v320 = vand.u32 %v177, 4294901760
        %v321 = vsub.f32 %v177, %v320
        %v322 = vand.u32 %v321, 4294901760
        %v323 = vsub.f32 %v321, %v322
        %v324 = vand.u32 %v323, 4294901760
        %325 = vmatpush1.msra.mxu0 %v324
        %326 = vmatprep.subr.mxu0 0.0
        %v327 = vand.u32 %v176, 4294901760
        %v328 = vsub.f32 %v176, %v327
        %v329 = vand.u32 %v328, 4294901760
        %v330 = vsub.f32 %v328, %v329
        %v331 = vand.u32 %v330, 4294901760
        %332 = vmatpush1.msra.mxu0 %v331
        %333 = vmatprep.subr.mxu0 0.0
        %v334 = vand.u32 %v175, 4294901760
        %v335 = vsub.f32 %v175, %v334
        %v336 = vand.u32 %v335, 4294901760
        %v337 = vsub.f32 %v335, %v336
        %v338 = vand.u32 %v337, 4294901760
        %339 = vmatpush1.msra.mxu0 %v338
        %340 = vmatprep.subr.mxu0 0.0
        %v341 = vand.u32 %v174, 4294901760
        %v342 = vsub.f32 %v174, %v341
        %v343 = vand.u32 %v342, 4294901760
        %v344 = vsub.f32 %v342, %v343
        %v345 = vand.u32 %v344, 4294901760
        %346 = vmatpush1.msra.mxu0 %v345
        %347 = vmatprep.subr.mxu0 0.0
        %v348 = vand.u32 %v173, 4294901760
        %v349 = vsub.f32 %v173, %v348
        %v350 = vand.u32 %v349, 4294901760
        %v351 = vsub.f32 %v349, %v350
        %v352 = vand.u32 %v351, 4294901760
        %353 = vmatpush1.msra.mxu0 %v352
        %354 = vmatprep.subr.mxu0 0.0
        %v355 = vand.u32 %v172, 4294901760
        %v356 = vsub.f32 %v172, %v355
        %v357 = vand.u32 %v356, 4294901760
        %v358 = vsub.f32 %v356, %v357
        %v359 = vand.u32 %v358, 4294901760
        %360 = vmatpush1.msra.mxu0 %v359
        %361 = vmatprep.subr.mxu0 0.0
        %v362 = vand.u32 %v171, 4294901760
        %v363 = vsub.f32 %v171, %v362
        %v364 = vand.u32 %v363, 4294901760
        %v365 = vsub.f32 %v363, %v364
        %v366 = vand.u32 %v365, 4294901760
        %367 = vmatpush1.msra.mxu0 %v366
        %368 = vmatprep.subr.mxu0 0.0
        %v369 = vand.u32 %v170, 4294901760
        %v370 = vsub.f32 %v170, %v369
        %v371 = vand.u32 %v370, 4294901760
        %v372 = vsub.f32 %v370, %v371
        %v373 = vand.u32 %v372, 4294901760
        %374 = vmatpush1.msra.mxu0 %v373
        %375 = vmatprep.subr.mxu0 0.0
        %v376 = vand.u32 %v169, 4294901760
        %v377 = vsub.f32 %v169, %v376
        %v378 = vand.u32 %v377, 4294901760
        %v379 = vsub.f32 %v377, %v378
        %v380 = vand.u32 %v379, 4294901760
        %381 = vmatpush1.msra.mxu0 %v380
        %382 = vmatprep.subr.mxu0 0.0
        %v383 = vand.u32 %v168, 4294901760
        %v384 = vsub.f32 %v168, %v383
        %v385 = vand.u32 %v384, 4294901760
        %v386 = vsub.f32 %v384, %v385
        %v387 = vand.u32 %v386, 4294901760
        %388 = vmatpush1.msra.mxu0 %v387
        %389 = vmatprep.subr.mxu0 0.0
        %v390 = vand.u32 %v167, 4294901760
        %v391 = vsub.f32 %v167, %v390
        %v392 = vand.u32 %v391, 4294901760
        %v393 = vsub.f32 %v391, %v392
        %v394 = vand.u32 %v393, 4294901760
        %395 = vmatpush1.msra.mxu0 %v394
        %396 = vmatprep.subr.mxu0 0.0
        %397 = vmatpush2.msra.mxu0 0.0
        %398 = vmatprep.subr.mxu0 0.0
        %399 = vmatpush2.msra.mxu0 0.0
        %400 = vmatprep.subr.mxu0 0.0
        %401 = vmatpush2.msra.mxu0 0.0
        %402 = vmatprep.subr.mxu0 0.0
        %403 = vmatpush2.msra.mxu0 0.0
        %404 = vmatprep.subr.mxu0 0.0
        %405 = vmatpush2.msra.mxu0 0.0
        %406 = vmatprep.subr.mxu0 0.0
        %407 = vmatpush2.msra.mxu0 0.0
        %408 = vmatprep.subr.mxu0 0.0
        %409 = vmatpush2.msra.mxu0 0.0
        %410 = vmatprep.subr.mxu0 0.0
        %411 = vmatpush2.msra.mxu0 0.0
        %412 = vmatprep.subr.mxu0 0.0
        %413 = vmatpush2.msra.mxu0 0.0
        %414 = vmatprep.subr.mxu0 0.0
        %415 = vmatpush2.msra.mxu0 0.0
        %416 = vmatprep.subr.mxu0 0.0
        %417 = vmatpush2.msra.mxu0 0.0
        %418 = vmatprep.subr.mxu0 0.0
        %419 = vmatpush2.msra.mxu0 0.0
        %420 = vmatprep.subr.mxu0 0.0
        %421 = vmatpush2.msra.mxu0 0.0
        %422 = vmatprep.subr.mxu0 0.0
        %423 = vmatpush2.msra.mxu0 0.0
        %424 = vmatprep.subr.mxu0 0.0
        %425 = vmatpush2.msra.mxu0 0.0
        %426 = vmatprep.subr.mxu0 0.0
        %427 = vmatpush2.msra.mxu0 0.0
        %428 = vmatprep.mubr.f32.mxu0 0.0
        %v429 = vand.u32 %v165, 4294901760
        %430 = vmatmul.mubr.f32.gmra.mxu0 %v429
        %v431 = vpop.f32.mrf.mxu0
        %v432 = vadd.f32 %v271, %v431
        %v433 = vpop.f32.mrf.mxu0
        %434 = vmatprep.mubr.f32.mxu0 0.0
        %v435 = vand.u32 %v166, 4294901760
        %436 = vmatmul.mubr.f32.gmra.mxu0 %v435
        %v437 = vpop.f32.mrf.mxu0
        %v438 = vadd.f32 %v281, %v437
        %v439 = vpop.f32.mrf.mxu0
        %440 = vdwg.mxu0
        %441 = vmatprep.subr.mxu0 0.0
        %v442 = vand.u32 %v182, 4294901760
        %v443 = vsub.f32 %v182, %v442
        %444 = vmatpush1.msra.mxu0 %v443
        %445 = vmatprep.subr.mxu0 0.0
        %v446 = vand.u32 %v181, 4294901760
        %v447 = vsub.f32 %v181, %v446
        %448 = vmatpush1.msra.mxu0 %v447
        %449 = vmatprep.subr.mxu0 0.0
        %v450 = vand.u32 %v180, 4294901760
        %v451 = vsub.f32 %v180, %v450
        %452 = vmatpush1.msra.mxu0 %v451
        %453 = vmatprep.subr.mxu0 0.0
        %v454 = vand.u32 %v179, 4294901760
        %v455 = vsub.f32 %v179, %v454
        %456 = vmatpush1.msra.mxu0 %v455
        %457 = vmatprep.subr.mxu0 0.0
        %v458 = vand.u32 %v178, 4294901760
        %v459 = vsub.f32 %v178, %v458
        %460 = vmatpush1.msra.mxu0 %v459
        %461 = vmatprep.subr.mxu0 0.0
        %v462 = vand.u32 %v177, 4294901760
        %v463 = vsub.f32 %v177, %v462
        %464 = vmatpush1.msra.mxu0 %v463
        %465 = vmatprep.subr.mxu0 0.0
        %v466 = vand.u32 %v176, 4294901760
        %v467 = vsub.f32 %v176, %v466
        %468 = vmatpush1.msra.mxu0 %v467
        %469 = vmatprep.subr.mxu0 0.0
        %v470 = vand.u32 %v175, 4294901760
        %v471 = vsub.f32 %v175, %v470
        %472 = vmatpush1.msra.mxu0 %v471
        %473 = vmatprep.subr.mxu0 0.0
        %v474 = vand.u32 %v174, 4294901760
        %v475 = vsub.f32 %v174, %v474
        %476 = vmatpush1.msra.mxu0 %v475
        %477 = vmatprep.subr.mxu0 0.0
        %v478 = vand.u32 %v173, 4294901760
        %v479 = vsub.f32 %v173, %v478
        %480 = vmatpush1.msra.mxu0 %v479
        %481 = vmatprep.subr.mxu0 0.0
        %v482 = vand.u32 %v172, 4294901760
        %v483 = vsub.f32 %v172, %v482
        %484 = vmatpush1.msra.mxu0 %v483
        %485 = vmatprep.subr.mxu0 0.0
        %v486 = vand.u32 %v171, 4294901760
        %v487 = vsub.f32 %v171, %v486
        %488 = vmatpush1.msra.mxu0 %v487
        %489 = vmatprep.subr.mxu0 0.0
        %v490 = vand.u32 %v170, 4294901760
        %v491 = vsub.f32 %v170, %v490
        %492 = vmatpush1.msra.mxu0 %v491
        %493 = vmatprep.subr.mxu0 0.0
        %v494 = vand.u32 %v169, 4294901760
        %v495 = vsub.f32 %v169, %v494
        %496 = vmatpush1.msra.mxu0 %v495
        %497 = vmatprep.subr.mxu0 0.0
        %v498 = vand.u32 %v168, 4294901760
        %v499 = vsub.f32 %v168, %v498
        %500 = vmatpush1.msra.mxu0 %v499
        %501 = vmatprep.subr.mxu0 0.0
        %v502 = vand.u32 %v167, 4294901760
        %v503 = vsub.f32 %v167, %v502
        %504 = vmatpush1.msra.mxu0 %v503
        %505 = vmatprep.subr.mxu0 0.0
        %506 = vmatpush2.msra.mxu0 0.0
        %507 = vmatprep.subr.mxu0 0.0
        %508 = vmatpush2.msra.mxu0 0.0
        %509 = vmatprep.subr.mxu0 0.0
        %510 = vmatpush2.msra.mxu0 0.0
        %511 = vmatprep.subr.mxu0 0.0
        %512 = vmatpush2.msra.mxu0 0.0
        %513 = vmatprep.subr.mxu0 0.0
        %514 = vmatpush2.msra.mxu0 0.0
        %515 = vmatprep.subr.mxu0 0.0
        %516 = vmatpush2.msra.mxu0 0.0
        %517 = vmatprep.subr.mxu0 0.0
        %518 = vmatpush2.msra.mxu0 0.0
        %519 = vmatprep.subr.mxu0 0.0
        %520 = vmatpush2.msra.mxu0 0.0
        %521 = vmatprep.subr.mxu0 0.0
        %522 = vmatpush2.msra.mxu0 0.0
        %523 = vmatprep.subr.mxu0 0.0
        %524 = vmatpush2.msra.mxu0 0.0
        %525 = vmatprep.subr.mxu0 0.0
        %526 = vmatpush2.msra.mxu0 0.0
        %527 = vmatprep.subr.mxu0 0.0
        %528 = vmatpush2.msra.mxu0 0.0
        %529 = vmatprep.subr.mxu0 0.0
        %530 = vmatpush2.msra.mxu0 0.0
        %531 = vmatprep.subr.mxu0 0.0
        %532 = vmatpush2.msra.mxu0 0.0
        %533 = vmatprep.subr.mxu0 0.0
        %534 = vmatpush2.msra.mxu0 0.0
        %535 = vmatprep.subr.mxu0 0.0
        %536 = vmatpush2.msra.mxu0 0.0
        %537 = vmatprep.mubr.f32.mxu0 0.0
        %v538 = vand.u32 %v165, 4294901760
        %v539 = vsub.f32 %v165, %v538
        %540 = vmatmul.mubr.f32.gmra.mxu0 %v539
        %v541 = vpop.f32.mrf.mxu0
        %v542 = vadd.f32 %v432, %v541
        %v543 = vpop.f32.mrf.mxu0
        %544 = vmatprep.mubr.f32.mxu0 0.0
        %v545 = vand.u32 %v166, 4294901760
        %v546 = vsub.f32 %v166, %v545
        %547 = vmatmul.mubr.f32.gmra.mxu0 %v546
        %v548 = vpop.f32.mrf.mxu0
        %v549 = vadd.f32 %v438, %v548
        %v550 = vpop.f32.mrf.mxu0
        %551 = vdwg.mxu0
        %552 = vmatprep.subr.mxu0 0.0
        %v553 = vand.u32 %v182, 4294901760
        %554 = vmatpush1.msra.mxu0 %v553
        %555 = vmatprep.subr.mxu0 0.0
        %v556 = vand.u32 %v181, 4294901760
        %557 = vmatpush1.msra.mxu0 %v556
        %558 = vmatprep.subr.mxu0 0.0
        %v559 = vand.u32 %v180, 4294901760
        %560 = vmatpush1.msra.mxu0 %v559
        %561 = vmatprep.subr.mxu0 0.0
        %v562 = vand.u32 %v179, 4294901760
        %563 = vmatpush1.msra.mxu0 %v562
        %564 = vmatprep.subr.mxu0 0.0
        %v565 = vand.u32 %v178, 4294901760
        %566 = vmatpush1.msra.mxu0 %v565
        %567 = vmatprep.subr.mxu0 0.0
        %v568 = vand.u32 %v177, 4294901760
        %569 = vmatpush1.msra.mxu0 %v568
        %570 = vmatprep.subr.mxu0 0.0
        %v571 = vand.u32 %v176, 4294901760
        %572 = vmatpush1.msra.mxu0 %v571
        %573 = vmatprep.subr.mxu0 0.0
        %v574 = vand.u32 %v175, 4294901760
        %575 = vmatpush1.msra.mxu0 %v574
        %576 = vmatprep.subr.mxu0 0.0
        %v577 = vand.u32 %v174, 4294901760
        %578 = vmatpush1.msra.mxu0 %v577
        %579 = vmatprep.subr.mxu0 0.0
        %v580 = vand.u32 %v173, 4294901760
        %581 = vmatpush1.msra.mxu0 %v580
        %582 = vmatprep.subr.mxu0 0.0
        %v583 = vand.u32 %v172, 4294901760
        %584 = vmatpush1.msra.mxu0 %v583
        %585 = vmatprep.subr.mxu0 0.0
        %v586 = vand.u32 %v171, 4294901760
        %587 = vmatpush1.msra.mxu0 %v586
        %588 = vmatprep.subr.mxu0 0.0
        %v589 = vand.u32 %v170, 4294901760
        %590 = vmatpush1.msra.mxu0 %v589
        %591 = vmatprep.subr.mxu0 0.0
        %v592 = vand.u32 %v169, 4294901760
        %593 = vmatpush1.msra.mxu0 %v592
        %594 = vmatprep.subr.mxu0 0.0
        %v595 = vand.u32 %v168, 4294901760
        %596 = vmatpush1.msra.mxu0 %v595
        %597 = vmatprep.subr.mxu0 0.0
        %v598 = vand.u32 %v167, 4294901760
        %599 = vmatpush1.msra.mxu0 %v598
        %600 = vmatprep.subr.mxu0 0.0
        %601 = vmatpush2.msra.mxu0 0.0
        %602 = vmatprep.subr.mxu0 0.0
        %603 = vmatpush2.msra.mxu0 0.0
        %604 = vmatprep.subr.mxu0 0.0
        %605 = vmatpush2.msra.mxu0 0.0
        %606 = vmatprep.subr.mxu0 0.0
        %607 = vmatpush2.msra.mxu0 0.0
        %608 = vmatprep.subr.mxu0 0.0
        %609 = vmatpush2.msra.mxu0 0.0
        %610 = vmatprep.subr.mxu0 0.0
        %611 = vmatpush2.msra.mxu0 0.0
        %612 = vmatprep.subr.mxu0 0.0
        %613 = vmatpush2.msra.mxu0 0.0
        %614 = vmatprep.subr.mxu0 0.0
        %615 = vmatpush2.msra.mxu0 0.0
        %616 = vmatprep.subr.mxu0 0.0
        %617 = vmatpush2.msra.mxu0 0.0
        %618 = vmatprep.subr.mxu0 0.0
        %619 = vmatpush2.msra.mxu0 0.0
        %620 = vmatprep.subr.mxu0 0.0
        %621 = vmatpush2.msra.mxu0 0.0
        %622 = vmatprep.subr.mxu0 0.0
        %623 = vmatpush2.msra.mxu0 0.0
        %624 = vmatprep.subr.mxu0 0.0
        %625 = vmatpush2.msra.mxu0 0.0
        %626 = vmatprep.subr.mxu0 0.0
        %627 = vmatpush2.msra.mxu0 0.0
        %628 = vmatprep.subr.mxu0 0.0
        %629 = vmatpush2.msra.mxu0 0.0
        %630 = vmatprep.subr.mxu0 0.0
        %631 = vmatpush2.msra.mxu0 0.0
        %632 = vmatprep.mubr.f32.mxu0 0.0
        %v633 = vand.u32 %v165, 4294901760
        %v634 = vsub.f32 %v165, %v633
        %v635 = vand.u32 %v634, 4294901760
        %636 = vmatmul.mubr.f32.gmra.mxu0 %v635
        %v637 = vpop.f32.mrf.mxu0
        %v638 = vadd.f32 %v542, %v637
        %v639 = vpop.f32.mrf.mxu0
        %640 = vmatprep.mubr.f32.mxu0 0.0
        %v641 = vand.u32 %v166, 4294901760
        %v642 = vsub.f32 %v166, %v641
        %v643 = vand.u32 %v642, 4294901760
        %644 = vmatmul.mubr.f32.gmra.mxu0 %v643
        %v645 = vpop.f32.mrf.mxu0
        %v646 = vadd.f32 %v549, %v645
        %v647 = vpop.f32.mrf.mxu0
        %648 = vdwg.mxu0
        %649 = vmatprep.subr.mxu0 0.0
        %v650 = vand.u32 %v182, 4294901760
        %v651 = vsub.f32 %v182, %v650
        %v652 = vand.u32 %v651, 4294901760
        %653 = vmatpush1.msra.mxu0 %v652
        %654 = vmatprep.subr.mxu0 0.0
        %v655 = vand.u32 %v181, 4294901760
        %v656 = vsub.f32 %v181, %v655
        %v657 = vand.u32 %v656, 4294901760
        %658 = vmatpush1.msra.mxu0 %v657
        %659 = vmatprep.subr.mxu0 0.0
        %v660 = vand.u32 %v180, 4294901760
        %v661 = vsub.f32 %v180, %v660
        %v662 = vand.u32 %v661, 4294901760
        %663 = vmatpush1.msra.mxu0 %v662
        %664 = vmatprep.subr.mxu0 0.0
        %v665 = vand.u32 %v179, 4294901760
        %v666 = vsub.f32 %v179, %v665
        %v667 = vand.u32 %v666, 4294901760
        %668 = vmatpush1.msra.mxu0 %v667
        %669 = vmatprep.subr.mxu0 0.0
        %v670 = vand.u32 %v178, 4294901760
        %v671 = vsub.f32 %v178, %v670
        %v672 = vand.u32 %v671, 4294901760
        %673 = vmatpush1.msra.mxu0 %v672
        %674 = vmatprep.subr.mxu0 0.0
        %v675 = vand.u32 %v177, 4294901760
        %v676 = vsub.f32 %v177, %v675
        %v677 = vand.u32 %v676, 4294901760
        %678 = vmatpush1.msra.mxu0 %v677
        %679 = vmatprep.subr.mxu0 0.0
        %v680 = vand.u32 %v176, 4294901760
        %v681 = vsub.f32 %v176, %v680
        %v682 = vand.u32 %v681, 4294901760
        %683 = vmatpush1.msra.mxu0 %v682
        %684 = vmatprep.subr.mxu0 0.0
        %v685 = vand.u32 %v175, 4294901760
        %v686 = vsub.f32 %v175, %v685
        %v687 = vand.u32 %v686, 4294901760
        %688 = vmatpush1.msra.mxu0 %v687
        %689 = vmatprep.subr.mxu0 0.0
        %v690 = vand.u32 %v174, 4294901760
        %v691 = vsub.f32 %v174, %v690
        %v692 = vand.u32 %v691, 4294901760
        %693 = vmatpush1.msra.mxu0 %v692
        %694 = vmatprep.subr.mxu0 0.0
        %v695 = vand.u32 %v173, 4294901760
        %v696 = vsub.f32 %v173, %v695
        %v697 = vand.u32 %v696, 4294901760
        %698 = vmatpush1.msra.mxu0 %v697
        %699 = vmatprep.subr.mxu0 0.0
        %v700 = vand.u32 %v172, 4294901760
        %v701 = vsub.f32 %v172, %v700
        %v702 = vand.u32 %v701, 4294901760
        %703 = vmatpush1.msra.mxu0 %v702
        %704 = vmatprep.subr.mxu0 0.0
        %v705 = vand.u32 %v171, 4294901760
        %v706 = vsub.f32 %v171, %v705
        %v707 = vand.u32 %v706, 4294901760
        %708 = vmatpush1.msra.mxu0 %v707
        %709 = vmatprep.subr.mxu0 0.0
        %v710 = vand.u32 %v170, 4294901760
        %v711 = vsub.f32 %v170, %v710
        %v712 = vand.u32 %v711, 4294901760
        %713 = vmatpush1.msra.mxu0 %v712
        %714 = vmatprep.subr.mxu0 0.0
        %v715 = vand.u32 %v169, 4294901760
        %v716 = vsub.f32 %v169, %v715
        %v717 = vand.u32 %v716, 4294901760
        %718 = vmatpush1.msra.mxu0 %v717
        %719 = vmatprep.subr.mxu0 0.0
        %v720 = vand.u32 %v168, 4294901760
        %v721 = vsub.f32 %v168, %v720
        %v722 = vand.u32 %v721, 4294901760
        %723 = vmatpush1.msra.mxu0 %v722
        %724 = vmatprep.subr.mxu0 0.0
        %v725 = vand.u32 %v167, 4294901760
        %v726 = vsub.f32 %v167, %v725
        %v727 = vand.u32 %v726, 4294901760
        %728 = vmatpush1.msra.mxu0 %v727
        %729 = vmatprep.subr.mxu0 0.0
        %730 = vmatpush2.msra.mxu0 0.0
        %731 = vmatprep.subr.mxu0 0.0
        %732 = vmatpush2.msra.mxu0 0.0
        %733 = vmatprep.subr.mxu0 0.0
        %734 = vmatpush2.msra.mxu0 0.0
        %735 = vmatprep.subr.mxu0 0.0
        %736 = vmatpush2.msra.mxu0 0.0
        %737 = vmatprep.subr.mxu0 0.0
        %738 = vmatpush2.msra.mxu0 0.0
        %739 = vmatprep.subr.mxu0 0.0
        %740 = vmatpush2.msra.mxu0 0.0
        %741 = vmatprep.subr.mxu0 0.0
        %742 = vmatpush2.msra.mxu0 0.0
        %743 = vmatprep.subr.mxu0 0.0
        %744 = vmatpush2.msra.mxu0 0.0
        %745 = vmatprep.subr.mxu0 0.0
        %746 = vmatpush2.msra.mxu0 0.0
        %747 = vmatprep.subr.mxu0 0.0
        %748 = vmatpush2.msra.mxu0 0.0
        %749 = vmatprep.subr.mxu0 0.0
        %750 = vmatpush2.msra.mxu0 0.0
        %751 = vmatprep.subr.mxu0 0.0
        %752 = vmatpush2.msra.mxu0 0.0
        %753 = vmatprep.subr.mxu0 0.0
        %754 = vmatpush2.msra.mxu0 0.0
        %755 = vmatprep.subr.mxu0 0.0
        %756 = vmatpush2.msra.mxu0 0.0
        %757 = vmatprep.subr.mxu0 0.0
        %758 = vmatpush2.msra.mxu0 0.0
        %759 = vmatprep.subr.mxu0 0.0
        %760 = vmatpush2.msra.mxu0 0.0
        %761 = vmatprep.mubr.f32.mxu0 0.0
        %v762 = vand.u32 %v165, 4294901760
        %763 = vmatmul.mubr.f32.gmra.mxu0 %v762
        %v764 = vpop.f32.mrf.mxu0
        %v765 = vadd.f32 %v638, %v764
        %v766 = vpop.f32.mrf.mxu0
        %767 = vmatprep.mubr.f32.mxu0 0.0
        %v768 = vand.u32 %v166, 4294901760
        %769 = vmatmul.mubr.f32.gmra.mxu0 %v768
        %v770 = vpop.f32.mrf.mxu0
        %v771 = vadd.f32 %v646, %v770
        %v772 = vpop.f32.mrf.mxu0
        %773 = vdwg.mxu0
        %774 = vmatprep.subr.mxu0 0.0
        %v775 = vand.u32 %v182, 4294901760
        %776 = vmatpush1.msra.mxu0 %v775
        %777 = vmatprep.subr.mxu0 0.0
        %v778 = vand.u32 %v181, 4294901760
        %779 = vmatpush1.msra.mxu0 %v778
        %780 = vmatprep.subr.mxu0 0.0
        %v781 = vand.u32 %v180, 4294901760
        %782 = vmatpush1.msra.mxu0 %v781
        %783 = vmatprep.subr.mxu0 0.0
        %v784 = vand.u32 %v179, 4294901760
        %785 = vmatpush1.msra.mxu0 %v784
        %786 = vmatprep.subr.mxu0 0.0
        %v787 = vand.u32 %v178, 4294901760
        %788 = vmatpush1.msra.mxu0 %v787
        %789 = vmatprep.subr.mxu0 0.0
        %v790 = vand.u32 %v177, 4294901760
        %791 = vmatpush1.msra.mxu0 %v790
        %792 = vmatprep.subr.mxu0 0.0
        %v793 = vand.u32 %v176, 4294901760
        %794 = vmatpush1.msra.mxu0 %v793
        %795 = vmatprep.subr.mxu0 0.0
        %v796 = vand.u32 %v175, 4294901760
        %797 = vmatpush1.msra.mxu0 %v796
        %798 = vmatprep.subr.mxu0 0.0
        %v799 = vand.u32 %v174, 4294901760
        %800 = vmatpush1.msra.mxu0 %v799
        %801 = vmatprep.subr.mxu0 0.0
        %v802 = vand.u32 %v173, 4294901760
        %803 = vmatpush1.msra.mxu0 %v802
        %804 = vmatprep.subr.mxu0 0.0
        %v805 = vand.u32 %v172, 4294901760
        %806 = vmatpush1.msra.mxu0 %v805
        %807 = vmatprep.subr.mxu0 0.0
        %v808 = vand.u32 %v171, 4294901760
        %809 = vmatpush1.msra.mxu0 %v808
        %810 = vmatprep.subr.mxu0 0.0
        %v811 = vand.u32 %v170, 4294901760
        %812 = vmatpush1.msra.mxu0 %v811
        %813 = vmatprep.subr.mxu0 0.0
        %v814 = vand.u32 %v169, 4294901760
        %815 = vmatpush1.msra.mxu0 %v814
        %816 = vmatprep.subr.mxu0 0.0
        %v817 = vand.u32 %v168, 4294901760
        %818 = vmatpush1.msra.mxu0 %v817
        %819 = vmatprep.subr.mxu0 0.0
        %v820 = vand.u32 %v167, 4294901760
        %821 = vmatpush1.msra.mxu0 %v820
        %822 = vmatprep.subr.mxu0 0.0
        %823 = vmatpush2.msra.mxu0 0.0
        %824 = vmatprep.subr.mxu0 0.0
        %825 = vmatpush2.msra.mxu0 0.0
        %826 = vmatprep.subr.mxu0 0.0
        %827 = vmatpush2.msra.mxu0 0.0
        %828 = vmatprep.subr.mxu0 0.0
        %829 = vmatpush2.msra.mxu0 0.0
        %830 = vmatprep.subr.mxu0 0.0
        %831 = vmatpush2.msra.mxu0 0.0
        %832 = vmatprep.subr.mxu0 0.0
        %833 = vmatpush2.msra.mxu0 0.0
        %834 = vmatprep.subr.mxu0 0.0
        %835 = vmatpush2.msra.mxu0 0.0
        %836 = vmatprep.subr.mxu0 0.0
        %837 = vmatpush2.msra.mxu0 0.0
        %838 = vmatprep.subr.mxu0 0.0
        %839 = vmatpush2.msra.mxu0 0.0
        %840 = vmatprep.subr.mxu0 0.0
        %841 = vmatpush2.msra.mxu0 0.0
        %842 = vmatprep.subr.mxu0 0.0
        %843 = vmatpush2.msra.mxu0 0.0
        %844 = vmatprep.subr.mxu0 0.0
        %845 = vmatpush2.msra.mxu0 0.0
        %846 = vmatprep.subr.mxu0 0.0
        %847 = vmatpush2.msra.mxu0 0.0
        %848 = vmatprep.subr.mxu0 0.0
        %849 = vmatpush2.msra.mxu0 0.0
        %850 = vmatprep.subr.mxu0 0.0
        %851 = vmatpush2.msra.mxu0 0.0
        %852 = vmatprep.subr.mxu0 0.0
        %853 = vmatpush2.msra.mxu0 0.0
        %854 = vmatprep.mubr.f32.mxu0 0.0
        %v855 = vand.u32 %v165, 4294901760
        %856 = vmatmul.mubr.f32.gmra.mxu0 %v855
        %v857 = vpop.f32.mrf.mxu0
        %v858 = vadd.f32 %v765, %v857
        %v859 = vpop.f32.mrf.mxu0
        %860 = vmatprep.mubr.f32.mxu0 0.0
        %v861 = vand.u32 %v166, 4294901760
        %862 = vmatmul.mubr.f32.gmra.mxu0 %v861
        %v863 = vpop.f32.mrf.mxu0
        %v864 = vadd.f32 %v771, %v863
        %v865 = vpop.f32.mrf.mxu0
        %866 = vdwg.mxu0
        %867 = vst [vmem:[%s145] sm:$0xff] %v858
        %868 = vst [vmem:[%s145 + $0x8] sm:$0xff] %v864
        %s869 = sand.u32 %s68, 1
        %s870 = sand.u32 %s68, 1
        %s871 = smul.addr %s870, 16
        %s872 = scalar_lea.vmem [#allocation2], %s871
        // Predicated region
        $region29: #{_forward.1} parent=27 // pred_check
          %p873 = pneg %p78
        $region30: #{_forward.1} parent=27 // pred_check_branch
          %875 = sbr.rel (%p873) target = $region32
        $region31: #{_forward.1} parent=27 // pred_region
          %s876 = smul.u32 2, %s13
          %s877 = ssub.s32 3, %s876
          %p878 = scmp.lt.s32.totalorder %s877, 2
          %s879 = scalar_select %p878, %s877, 2
          %s880 = smul.u32 128, %s879
          %p881 = scmp.ne.s32.totalorder 0, %s880
          %s882 = smul.addr %s876, 8
          %s883 = scalar_lea.vmem %s2, %s882
          // Predicated region
          $region33: #{_forward.1} parent=31 // pred_check
            %p884 = pneg %p881
          $region34: #{_forward.1} parent=31 // pred_check_branch
            %886 = sbr.rel (%p884) target = $region36
          $region35: #{_forward.1} parent=31 // pred_region
            // Predicated region
            $region37: #{_forward.1} parent=35 // pred_check
              _
            $region38: #{_forward.1} parent=35 // pred_check_branch
              %888 = sbr.rel (0) target = $region40
            $region39: #{_forward.1} parent=35 // pred_region
              // Predicated region
              $region59: #{_forward.1} parent=39 // pred_check
                _
              $region60: #{_forward.1} parent=39 // pred_check_branch
                %940 = sbr.rel (0) target = $region62
              $region61: #{_forward.1} parent=39 // pred_region
                %s941 = sshrl.u32 %s879, 1
                // While loop
                $region63: #{_forward.1} parent=61 // loop_pre_header
                  _
                $region64: #{_forward.1} parent=61 // loop_header
                  %s943 = sphi 0, %s945
                  %p944 = scmp.ge.s32.totalorder %s943, %s941
                  %s948 = sphi 0, %s957
                  %s949 = sphi %s872, %s960
                  %s950 = sphi %s883, %s961
                $region65: #{_forward.1} parent=61 // loop_header_branch
                  %947 = sbr.rel (%p944) target = $region69
                $region66: #{_forward.1} parent=61 // loop_body
                  %v951 = vld [vmem:[%s949] sm:$0xff]
                  %952 = vst [vmem:[%s950] sm:$0xff] %v951
                  %v953 = vld [vmem:[%s949 + $0x8] sm:$0xff]
                  %954 = vst [vmem:[%s950 + $0x8] sm:$0xff] %v953
                  %s955 = sadd.s32 1, %s948
                  %p956 = scmp.ge.s32.totalorder %s955, %s941
                  %s957 = scalar_select %p956, 0, %s955
                  %s958 = smul.u32 %s957, 16
                  %s959 = smul.u32 %s957, 16
                  %s960 = scalar_lea.vmem %s872, %s958 [#allocation2]
                  %s961 = scalar_lea.vmem %s883, %s959
                $region67: #{_forward.1} parent=61 // loop_footer
                  %s945 = sadd.s32 %s943, 1
                $region68: #{_forward.1} parent=61 // loop_footer_branch
                  %942 = sbr.rel target = $region64
                $region69: #{_forward.1} parent=61 // loop_exit
                  _
                %s962 = sshrl.u32 %s879, 1
                %s963 = sand.u32 %s879, 1
                %s964 = smul.u32 %s962, 2
                %s965 = smul.u32 8, %s964
                %s966 = scalar_lea.vmem %s872, %s965 [#allocation2]
                %s967 = smul.u32 8, %s964
                %s968 = scalar_lea.vmem %s883, %s967
                // While loop
                $region70: #{_forward.1} parent=61 // loop_pre_header
                  _
                $region71: #{_forward.1} parent=61 // loop_header
                  %s970 = sphi 0, %s972
                  %p971 = scmp.ge.s32.totalorder %s970, %s963
                  %s975 = sphi 0, %s982
                  %s976 = sphi %s966, %s985
                  %s977 = sphi %s968, %s986
                $region72: #{_forward.1} parent=61 // loop_header_branch
                  %974 = sbr.rel (%p971) target = $region76
                $region73: #{_forward.1} parent=61 // loop_body
                  %v978 = vld [vmem:[%s976] sm:$0xff]
                  %979 = vst [vmem:[%s977] sm:$0xff] %v978
                  %s980 = sadd.s32 1, %s975
                  %p981 = scmp.ge.s32.totalorder %s980, %s963
                  %s982 = scalar_select %p981, 0, %s980
                  %s983 = smul.u32 %s982, 8
                  %s984 = smul.u32 %s982, 8
                  %s985 = scalar_lea.vmem %s966, %s983 [#allocation2]
                  %s986 = scalar_lea.vmem %s968, %s984
                $region74: #{_forward.1} parent=61 // loop_footer
                  %s972 = sadd.s32 %s970, 1
                $region75: #{_forward.1} parent=61 // loop_footer_branch
                  %969 = sbr.rel target = $region71
                $region76: #{_forward.1} parent=61 // loop_exit
                  _
              $region62: #{_forward.1} parent=39 // pred_fallthru
                _
              // Predicated region
              $region77: #{_forward.1} parent=39 // pred_check
                _
              $region78: #{_forward.1} parent=39 // pred_check_branch
                %988 = sbr.rel target = $region80
              $region79: #{_forward.1} parent=39 // pred_region
                _
              $region80: #{_forward.1} parent=39 // pred_fallthru
                _
            $region40: #{_forward.1} parent=35 // pred_fallthru
              _
            // Predicated region
            $region41: #{_forward.1} parent=35 // pred_check
              _
            $region42: #{_forward.1} parent=35 // pred_check_branch
              %890 = sbr.rel target = $region44
            $region43: #{_forward.1} parent=35 // pred_region
              %s892 = ssub.s32 256, 1
              %s893 = sshrl.u32 %s879, 1
              // While loop
              $region45: #{_forward.1} parent=43 // loop_pre_header
                _
              $region46: #{_forward.1} parent=43 // loop_header
                %s895 = sphi 0, %s897
                %p896 = scmp.ge.s32.totalorder %s895, %s893
                %s900 = sphi 0, %s909
                %s901 = sphi %s872, %s912
                %s902 = sphi %s883, %s913
              $region47: #{_forward.1} parent=43 // loop_header_branch
                %899 = sbr.rel (%p896) target = $region51
              $region48: #{_forward.1} parent=43 // loop_body
                %v903 = vld [vmem:[%s901] sm:%s892]
                %904 = vst [vmem:[%s902] sm:%s892] %v903
                %v905 = vld [vmem:[%s901 + $0x8] sm:%s892]
                %906 = vst [vmem:[%s902 + $0x8] sm:%s892] %v905
                %s907 = sadd.s32 1, %s900
                %p908 = scmp.ge.s32.totalorder %s907, %s893
                %s909 = scalar_select %p908, 0, %s907
                %s910 = smul.u32 %s909, 16
                %s911 = smul.u32 %s909, 16
                %s912 = scalar_lea.vmem %s872, %s910 [#allocation2]
                %s913 = scalar_lea.vmem %s883, %s911
              $region49: #{_forward.1} parent=43 // loop_footer
                %s897 = sadd.s32 %s895, 1
              $region50: #{_forward.1} parent=43 // loop_footer_branch
                %894 = sbr.rel target = $region46
              $region51: #{_forward.1} parent=43 // loop_exit
                _
              %s914 = sshrl.u32 %s879, 1
              %s915 = sand.u32 %s879, 1
              %s916 = smul.u32 %s914, 2
              %s917 = smul.u32 8, %s916
              %s918 = scalar_lea.vmem %s872, %s917 [#allocation2]
              %s919 = smul.u32 8, %s916
              %s920 = scalar_lea.vmem %s883, %s919
              // While loop
              $region52: #{_forward.1} parent=43 // loop_pre_header
                _
              $region53: #{_forward.1} parent=43 // loop_header
                %s922 = sphi 0, %s924
                %p923 = scmp.ge.s32.totalorder %s922, %s915
                %s927 = sphi 0, %s934
                %s928 = sphi %s918, %s937
                %s929 = sphi %s920, %s938
              $region54: #{_forward.1} parent=43 // loop_header_branch
                %926 = sbr.rel (%p923) target = $region58
              $region55: #{_forward.1} parent=43 // loop_body
                %v930 = vld [vmem:[%s928] sm:%s892]
                %931 = vst [vmem:[%s929] sm:%s892] %v930
                %s932 = sadd.s32 1, %s927
                %p933 = scmp.ge.s32.totalorder %s932, %s915
                %s934 = scalar_select %p933, 0, %s932
                %s935 = smul.u32 %s934, 8
                %s936 = smul.u32 %s934, 8
                %s937 = scalar_lea.vmem %s918, %s935 [#allocation2]
                %s938 = scalar_lea.vmem %s920, %s936
              $region56: #{_forward.1} parent=43 // loop_footer
                %s924 = sadd.s32 %s922, 1
              $region57: #{_forward.1} parent=43 // loop_footer_branch
                %921 = sbr.rel target = $region53
              $region58: #{_forward.1} parent=43 // loop_exit
                _
            $region44: #{_forward.1} parent=35 // pred_fallthru
              _
          $region36: #{_forward.1} parent=31 // pred_fallthru
            _
          %989 = vnop
        $region32: #{_forward.1} parent=27 // pred_fallthru
          _
      $region28: #{_forward.1} parent=5 // pred_fallthru
        _
      %p990 = scmp.le.s32.totalorder 2, %s8
      // Predicated region
      $region81: #{_forward.1} parent=5 // pred_check
        %p991 = pneg %p990
      $region82: #{_forward.1} parent=5 // pred_check_branch
        %993 = sbr.rel (%p991) target = $region84
      $region83: #{_forward.1} parent=5 // pred_region
        %s994 = ssub.s32 %s8, 2
        // Predicated region
        $region85: #{_forward.1} parent=83 // pred_check
          %p995 = pneg %p84
        $region86: #{_forward.1} parent=83 // pred_check_branch
          %997 = sbr.rel (%p995) target = $region88
        $region87: #{_forward.1} parent=83 // pred_region
          %s998 = sand.u32 %s69, 1
          %s999 = sand.u32 %s69, 1
          %s1000 = smul.addr %s999, 16
          %s1001 = scalar_lea.vmem [#allocation2], %s1000
        $region88: #{_forward.1} parent=83 // pred_fallthru
          _
      $region84: #{_forward.1} parent=5 // pred_fallthru
        _
    $region6: #{_forward.1} parent=1 // loop_footer
      %s12 = sadd.s32 1, %s8
    $region7: #{_forward.1} parent=1 // loop_footer_branch
      %7 = sbr.rel target = $region3
    $region8: #{_forward.1} parent=1 // loop_exit
      _

</llo_original>
